<compile_context>
chip_gen: v5e
topology: v5e:2x2
jax: 0.10.0
libtpu: 0.0.40
codegen_flags: <defaults>
</compile_context>

<pallas_src>
import jax
import jax.numpy as jnp
from jax.experimental import pallas as pl
from jax.experimental.pallas import tpu as pltpu

LANE = 128


def mask_concat_kernel(img_ref, line_ref, edge_ref, mask_ref,
                       inp_ref, imgm_ref, edgem_ref):
    """One (spatial-tile, batch) block per grid step.

    img_ref   : (1, 3, TS, 128)  RGB image tile
    line_ref  : (1, 1, TS, 128)  line-map tile
    edge_ref  : (1, 1, TS, 128)  edge-map tile
    mask_ref  : (1, 1, TS, 128)  binary mask tile (1 = hole)
    inp_ref   : (1, 6, TS, 128)  concatenated generator-input tile
    imgm_ref  : (1, 3, TS, 128)  images_masked output tile
    edgem_ref : (1, 1, TS, 128)  edges_masked output tile
    """
    m = mask_ref[...]                      # (1, 1, TS, 128)
    inv = 1.0 - m                          # computed in the input dtype
    img_m = img_ref[...] * inv + m         # mask broadcasts over channel axis
    edge_m = edge_ref[...] * inv

    # channel layout: [images_masked(3) | lines_masked(1) | edges_masked(1) | masks(1)]
    inp_ref[:, 0:3] = img_m
    inp_ref[:, 3:4] = line_ref[...]        # is_train=False -> lines.clone()
    inp_ref[:, 4:5] = edge_m
    inp_ref[:, 5:6] = m
    imgm_ref[...] = img_m
    edgem_ref[...] = edge_m


def _choose_row_tile(rows, batch, sub, cap=1024):
    """Pick a sublane-aligned spatial tile; guarantee >=2 parallel grid steps
    (for v7x's two TensorCores) whenever the problem is big enough to split."""
    if rows <= cap:
        ts = rows                          # full extent: always a legal block dim
    else:
        ts = cap                           # multiple of `sub`
    n_steps = batch * ((rows + ts - 1) // ts)
    if n_steps < 2 and rows > sub:
        half = (rows + 1) // 2
        ts = min(rows, max(sub, ((half + sub - 1) // sub) * sub))
    return ts


def shared_we_forward(images, lines, edges, masks):
    """JAX wrapper reproducing SharedWEModel.forward pre-generator semantics."""
    B, Ci, H, W = images.shape
    assert Ci == 3 and lines.shape == (B, 1, H, W)
    assert edges.shape == (B, 1, H, W) and masks.shape == (B, 1, H, W)
    dt = images.dtype
    itemsize = jnp.dtype(dt).itemsize
    sub = {4: 8, 2: 16, 1: 32}.get(itemsize, 8)   # min dense sublane multiple

    # Match PyTorch's `(1 - masks).float()` arithmetic in the model dtype.
    masks = masks.astype(dt)

    HW = H * W
    HW_pad = ((HW + LANE - 1) // LANE) * LANE     # no-op for typical 2^k images
    rows = HW_pad // LANE

    def to_rows(x, c):
        x = x.reshape(B, c, HW)
        if HW_pad != HW:
            x = jnp.pad(x, ((0, 0), (0, 0), (0, HW_pad - HW)))
        return x.reshape(B, c, rows, LANE)        # dense (sublane, lane) layout

    img_r = to_rows(images, 3)
    line_r = to_rows(lines, 1)
    edge_r = to_rows(edges, 1)
    mask_r = to_rows(masks, 1)

    ts = _choose_row_tile(rows, B, sub, cap=1024)
    n_tiles = (rows + ts - 1) // ts

    def spec(c):
        # grid = (spatial tile, batch); spatial first so megacore splits it.
        return pl.BlockSpec((1, c, ts, LANE), lambda t, b: (b, 0, t, 0))

    # 6 planes read, 10 planes written (concat + images_masked + edges_masked).
    cost = pl.CostEstimate(
        flops=8 * B * HW_pad,
        transcendentals=0,
        bytes_accessed=(6 + 10) * B * HW_pad * itemsize,
    )

    inputs_r, imgm_r, edgem_r = pl.pallas_call(
        mask_concat_kernel,
        out_shape=(
            jax.ShapeDtypeStruct((B, 6, rows, LANE), dt),
            jax.ShapeDtypeStruct((B, 3, rows, LANE), dt),
            jax.ShapeDtypeStruct((B, 1, rows, LANE), dt),
        ),
        grid=(n_tiles, B),
        in_specs=[spec(3), spec(1), spec(1), spec(1)],
        out_specs=(spec(6), spec(3), spec(1)),
        compiler_params=pltpu.CompilerParams(
            dimension_semantics=("parallel", "parallel"),
            vmem_limit_bytes=32 * 1024 * 1024,
        ),
        cost_estimate=cost,
    )(img_r, line_r, edge_r, mask_r)

    def from_rows(x, c):
        x = x.reshape(B, c, HW_pad)
        if HW_pad != HW:
            x = x[:, :, :HW]
        return x.reshape(B, c, H, W)

    meta_outputs = {
        # TODO(synk): 'img_out' / 'edge_out' / 'line_out' / 'att_score' require
        # SWEGenerator (undefined submodules in the reference source).
        "generator_inputs": from_rows(inputs_r, 6),
        "images_masked": from_rows(imgm_r, 3),
        "edges_masked": from_rows(edgem_r, 1),
        "lines_masked": lines,                    # identity on the eval path
    }
    return meta_outputs


if __name__ == "__main__":
    key = jax.random.PRNGKey(0)
    k_img, k_line, k_edge, k_mask = jax.random.split(key, 4)

    B, H, W = 2, 16, 16
    images = jax.random.uniform(k_img, (B, 3, H, W), dtype=jnp.float32)
    lines = jax.random.uniform(k_line, (B, 1, H, W), dtype=jnp.float32)
    edges = jax.random.uniform(k_edge, (B, 1, H, W), dtype=jnp.float32)
    masks = (jax.random.uniform(k_mask, (B, 1, H, W)) > 0.5).astype(jnp.float32)

    out = shared_we_forward(images, lines, edges, masks)
    jax.block_until_ready(out)

    # pure-JAX reference for correctness
    inv = 1.0 - masks
    ref_imgm = images * inv + masks
    ref_edgem = edges * inv
    ref_linem = lines
    ref_inputs = jnp.concatenate([ref_imgm, ref_linem, ref_edgem, masks], axis=1)

    assert jnp.allclose(out["generator_inputs"], ref_inputs, atol=1e-6)
    assert jnp.allclose(out["images_masked"], ref_imgm, atol=1e-6)
    assert jnp.allclose(out["edges_masked"], ref_edgem, atol=1e-6)
    assert jnp.allclose(out["lines_masked"], ref_linem, atol=1e-6)

    print("KERNEL_OK")
</pallas_src>

<mosaic_0001>
module attributes {stable_mosaic.version = 11 : i64} {
  func.func @mask_concat_kernel(%arg0: i32, %arg1: i32, %arg2: memref<1x3x2x128xf32, #tpu.memory_space<vmem>>, %arg3: memref<1x1x2x128xf32, #tpu.memory_space<vmem>>, %arg4: memref<1x1x2x128xf32, #tpu.memory_space<vmem>>, %arg5: memref<1x1x2x128xf32, #tpu.memory_space<vmem>>, %arg6: memref<1x6x2x128xf32, #tpu.memory_space<vmem>>, %arg7: memref<1x3x2x128xf32, #tpu.memory_space<vmem>>, %arg8: memref<1x1x2x128xf32, #tpu.memory_space<vmem>>) attributes {dimension_semantics = [#tpu.dimension_semantics<parallel>, #tpu.dimension_semantics<parallel>], iteration_bounds = array<i64: 1, 2>, scalar_prefetch = 0 : i64, scratch_operands = 0 : i64, tpu.core_type = #tpu.core_type<tc>, window_params = [{transform_indices = @transform_0, window_bounds = array<i64: 1, 3, 2, 128>}, {transform_indices = @transform_1, window_bounds = array<i64: 1, 1, 2, 128>}, {transform_indices = @transform_2, window_bounds = array<i64: 1, 1, 2, 128>}, {transform_indices = @transform_3, window_bounds = array<i64: 1, 1, 2, 128>}, {transform_indices = @transform_4, window_bounds = array<i64: 1, 6, 2, 128>}, {transform_indices = @transform_5, window_bounds = array<i64: 1, 3, 2, 128>}, {transform_indices = @transform_6, window_bounds = array<i64: 1, 1, 2, 128>}]} {
    %c0 = arith.constant 0 : index
    %c0_0 = arith.constant 0 : index
    %c0_1 = arith.constant 0 : index
    %c0_2 = arith.constant 0 : index
    %0 = vector.load %arg5[%c0, %c0_0, %c0_1, %c0_2] : memref<1x1x2x128xf32, #tpu.memory_space<vmem>>, vector<1x1x2x128xf32>
    %cst = arith.constant 1.000000e+00 : f32
    %1 = vector.broadcast %cst : f32 to vector<1x1x2x128xf32>
    %2 = arith.subf %1, %0 : vector<1x1x2x128xf32>
    %c0_3 = arith.constant 0 : index
    %c0_4 = arith.constant 0 : index
    %c0_5 = arith.constant 0 : index
    %c0_6 = arith.constant 0 : index
    %3 = vector.load %arg2[%c0_3, %c0_4, %c0_5, %c0_6] : memref<1x3x2x128xf32, #tpu.memory_space<vmem>>, vector<1x3x2x128xf32>
    %4 = vector.broadcast %2 : vector<1x1x2x128xf32> to vector<1x3x2x128xf32>
    %5 = arith.mulf %3, %4 : vector<1x3x2x128xf32>
    %6 = vector.broadcast %0 : vector<1x1x2x128xf32> to vector<1x3x2x128xf32>
    %7 = arith.addf %5, %6 : vector<1x3x2x128xf32>
    %c0_7 = arith.constant 0 : index
    %c0_8 = arith.constant 0 : index
    %c0_9 = arith.constant 0 : index
    %c0_10 = arith.constant 0 : index
    %8 = vector.load %arg4[%c0_7, %c0_8, %c0_9, %c0_10] : memref<1x1x2x128xf32, #tpu.memory_space<vmem>>, vector<1x1x2x128xf32>
    %9 = arith.mulf %8, %2 : vector<1x1x2x128xf32>
    %c0_11 = arith.constant 0 : index
    %c0_12 = arith.constant 0 : index
    %c0_13 = arith.constant 0 : index
    %c0_14 = arith.constant 0 : index
    %10 = vector.load %arg6[%c0_11, %c0_12, %c0_13, %c0_14] : memref<1x6x2x128xf32, #tpu.memory_space<vmem>>, vector<1x3x2x128xf32>
    tpu.vector_store %arg6[%c0_11, %c0_12, %c0_13, %c0_14], %7 {strides = array<i32>} : memref<1x6x2x128xf32, #tpu.memory_space<vmem>>, vector<1x3x2x128xf32>,
    %c0_15 = arith.constant 0 : index
    %c0_16 = arith.constant 0 : index
    %c0_17 = arith.constant 0 : index
    %c0_18 = arith.constant 0 : index
    %11 = vector.load %arg3[%c0_15, %c0_16, %c0_17, %c0_18] : memref<1x1x2x128xf32, #tpu.memory_space<vmem>>, vector<1x1x2x128xf32>
    %c0_19 = arith.constant 0 : index
    %c3 = arith.constant 3 : index
    %c0_20 = arith.constant 0 : index
    %c0_21 = arith.constant 0 : index
    %12 = vector.load %arg6[%c0_19, %c3, %c0_20, %c0_21] : memref<1x6x2x128xf32, #tpu.memory_space<vmem>>, vector<1x1x2x128xf32>
    tpu.vector_store %arg6[%c0_19, %c3, %c0_20, %c0_21], %11 {strides = array<i32>} : memref<1x6x2x128xf32, #tpu.memory_space<vmem>>, vector<1x1x2x128xf32>,
    %c0_22 = arith.constant 0 : index
    %c4 = arith.constant 4 : index
    %c0_23 = arith.constant 0 : index
    %c0_24 = arith.constant 0 : index
    %13 = vector.load %arg6[%c0_22, %c4, %c0_23, %c0_24] : memref<1x6x2x128xf32, #tpu.memory_space<vmem>>, vector<1x1x2x128xf32>
    tpu.vector_store %arg6[%c0_22, %c4, %c0_23, %c0_24], %9 {strides = array<i32>} : memref<1x6x2x128xf32, #tpu.memory_space<vmem>>, vector<1x1x2x128xf32>,
    %c0_25 = arith.constant 0 : index
    %c5 = arith.constant 5 : index
    %c0_26 = arith.constant 0 : index
    %c0_27 = arith.constant 0 : index
    %14 = vector.load %arg6[%c0_25, %c5, %c0_26, %c0_27] : memref<1x6x2x128xf32, #tpu.memory_space<vmem>>, vector<1x1x2x128xf32>
    tpu.vector_store %arg6[%c0_25, %c5, %c0_26, %c0_27], %0 {strides = array<i32>} : memref<1x6x2x128xf32, #tpu.memory_space<vmem>>, vector<1x1x2x128xf32>,
    %c0_28 = arith.constant 0 : index
    %c0_29 = arith.constant 0 : index
    %c0_30 = arith.constant 0 : index
    %c0_31 = arith.constant 0 : index
    %15 = vector.load %arg7[%c0_28, %c0_29, %c0_30, %c0_31] : memref<1x3x2x128xf32, #tpu.memory_space<vmem>>, vector<1x3x2x128xf32>
    tpu.vector_store %arg7[%c0_28, %c0_29, %c0_30, %c0_31], %7 {strides = array<i32>} : memref<1x3x2x128xf32, #tpu.memory_space<vmem>>, vector<1x3x2x128xf32>,
    %c0_32 = arith.constant 0 : index
    %c0_33 = arith.constant 0 : index
    %c0_34 = arith.constant 0 : index
    %c0_35 = arith.constant 0 : index
    %16 = vector.load %arg8[%c0_32, %c0_33, %c0_34, %c0_35] : memref<1x1x2x128xf32, #tpu.memory_space<vmem>>, vector<1x1x2x128xf32>
    tpu.vector_store %arg8[%c0_32, %c0_33, %c0_34, %c0_35], %9 {strides = array<i32>} : memref<1x1x2x128xf32, #tpu.memory_space<vmem>>, vector<1x1x2x128xf32>,
    return
  }
  func.func @transform_0(%arg0: i32, %arg1: i32) -> (i32, i32, i32, i32) {
    %c0_i32 = arith.constant 0 : i32
    %c0_i32_0 = arith.constant 0 : i32
    %c0_i32_1 = arith.constant 0 : i32
    return %arg1, %c0_i32, %arg0, %c0_i32_0 : i32, i32, i32, i32
  }
  func.func @transform_1(%arg0: i32, %arg1: i32) -> (i32, i32, i32, i32) {
    %c0_i32 = arith.constant 0 : i32
    %c0_i32_0 = arith.constant 0 : i32
    %c0_i32_1 = arith.constant 0 : i32
    return %arg1, %c0_i32, %arg0, %c0_i32_0 : i32, i32, i32, i32
  }
  func.func @transform_2(%arg0: i32, %arg1: i32) -> (i32, i32, i32, i32) {
    %c0_i32 = arith.constant 0 : i32
    %c0_i32_0 = arith.constant 0 : i32
    %c0_i32_1 = arith.constant 0 : i32
    return %arg1, %c0_i32, %arg0, %c0_i32_0 : i32, i32, i32, i32
  }
  func.func @transform_3(%arg0: i32, %arg1: i32) -> (i32, i32, i32, i32) {
    %c0_i32 = arith.constant 0 : i32
    %c0_i32_0 = arith.constant 0 : i32
    %c0_i32_1 = arith.constant 0 : i32
    return %arg1, %c0_i32, %arg0, %c0_i32_0 : i32, i32, i32, i32
  }
  func.func @transform_4(%arg0: i32, %arg1: i32) -> (i32, i32, i32, i32) {
    %c0_i32 = arith.constant 0 : i32
    %c0_i32_0 = arith.constant 0 : i32
    %c0_i32_1 = arith.constant 0 : i32
    return %arg1, %c0_i32, %arg0, %c0_i32_0 : i32, i32, i32, i32
  }
  func.func @transform_5(%arg0: i32, %arg1: i32) -> (i32, i32, i32, i32) {
    %c0_i32 = arith.constant 0 : i32
    %c0_i32_0 = arith.constant 0 : i32
    %c0_i32_1 = arith.constant 0 : i32
    return %arg1, %c0_i32, %arg0, %c0_i32_0 : i32, i32, i32, i32
  }
  func.func @transform_6(%arg0: i32, %arg1: i32) -> (i32, i32, i32, i32) {
    %c0_i32 = arith.constant 0 : i32
    %c0_i32_0 = arith.constant 0 : i32
    %c0_i32_1 = arith.constant 0 : i32
    return %arg1, %c0_i32, %arg0, %c0_i32_0 : i32, i32, i32, i32
  }
}

</mosaic_0001>

<llo_original>
// kernel: tpu_custom_call.1
$region0: #{tpu_custom_call.1}
  #allocation0 [shape = 'u32[]', space=smem, size = 0x4, offset = 0x4, fixed_abs, tag = 'smem constant byte address 0x4 - core index']
  #allocation1 [shape = 'u32[72,128]{1,0:T(1,128)}', space=vmem, size = 0x9000, scoped, tag = 'internal scratch']
  %s0 = inlined_call_operand.hbm [shape: f32[2,3,2,128], index: 0, kind: input, shape index: {}]
  %s1 = inlined_call_operand.hbm [shape: f32[2,1,2,128], index: 1, kind: input, shape index: {}]
  %s2 = inlined_call_operand.hbm [shape: f32[2,1,2,128], index: 2, kind: input, shape index: {}]
  %s3 = inlined_call_operand.hbm [shape: f32[2,1,2,128], index: 3, kind: input, shape index: {}]
  %s4 = inlined_call_operand.hbm [shape: f32[2,6,2,128], index: 4, kind: output, shape index: {0}]
  %s5 = inlined_call_operand.hbm [shape: f32[2,3,2,128], index: 5, kind: output, shape index: {1}]
  %s6 = inlined_call_operand.hbm [shape: f32[2,1,2,128], index: 6, kind: output, shape index: {2}]
  %7 = xla_tuple %s4, %s5, %s6
  %s8 = sld [smem:[#allocation0]]
  $region81: #{tpu_custom_call.1} parent=0
    _
  %s10 = ssub.s32 1, %s8
  %s11 = scalar_select 0, %s10, %s8
  $region1: #{tpu_custom_call.1} parent=0
    #allocation2 [shape = 'u8[6144]{0}', space=vmem, size = 0x1800, scoped, tag = 'input window, operand 0']
    #allocation3 [shape = 's32[2]{0}', space=sflag, size = 0x8, scoped, tag = 'scoped memory for tpu_custom_call.1']
    #allocation4 [shape = 's32[2]{0}', space=sflag, size = 0x8, scoped, tag = 'scoped memory for tpu_custom_call.1']
    #allocation5 [shape = 'u8[2048]{0}', space=vmem, size = 0x800, scoped, tag = 'input window, operand 1']
    #allocation6 [shape = 's32[2]{0}', space=sflag, size = 0x8, scoped, tag = 'scoped memory for tpu_custom_call.1']
    #allocation7 [shape = 'u8[2048]{0}', space=vmem, size = 0x800, scoped, tag = 'input window, operand 2']
    #allocation8 [shape = 'u8[2048]{0}', space=vmem, size = 0x800, scoped, tag = 'input window, operand 3']
    #allocation9 [shape = 's32[2]{0}', space=sflag, size = 0x8, scoped, tag = 'scoped memory for tpu_custom_call.1']
    #allocation10 [shape = 'u8[12288]{0}', space=vmem, size = 0x3000, scoped, tag = 'output window, operand 0']
    #allocation11 [shape = 'u8[6144]{0}', space=vmem, size = 0x1800, scoped, tag = 'output window, operand 1']
    #allocation12 [shape = 's32[2]{0}', space=sflag, size = 0x8, scoped, tag = 'scoped memory for tpu_custom_call.1']
    #allocation13 [shape = 'u8[2048]{0}', space=vmem, size = 0x800, scoped, tag = 'output window, operand 2']
    %12 = vsyncpa [#allocation3], 0
    %s13 = scalar_lea.sflag [#allocation3], 1
    %14 = vsyncpa %s13, 0
    %15 = vsyncpa [#allocation6], 0
    %s16 = scalar_lea.sflag [#allocation6], 1
    %17 = vsyncpa %s16, 0
    %18 = vsyncpa [#allocation9], 0
    %s19 = scalar_lea.sflag [#allocation9], 1
    %20 = vsyncpa %s19, 0
    %21 = vsyncpa [#allocation4], 0
    %s22 = scalar_lea.sflag [#allocation4], 1
    %23 = vsyncpa %s22, 0
    %24 = vsyncpa [#allocation12], 0
    %s25 = scalar_lea.sflag [#allocation12], 1
    %26 = vsyncpa %s25, 0
    loop: start=0, step=1, limit=4
    $region2: #{tpu_custom_call.1} parent=1 // loop_pre_header
      _
    $region3: #{tpu_custom_call.1} parent=1 // loop_header
      %s28 = sphi 0, %s32
      %p29 = scmp.ge.s32.totalorder %s28, 4
      %s35 = sphi 0, %s47
      %s36 = sphi 0, %s43
      %s37 = sphi 0, %s35
      %s38 = sphi 0, %s36
      %s39 = sphi 0, %s37
      %s40 = sphi 0, %s38
      %s52 = sphi 0, %s54
      %s55 = sphi 0, %s52
      %s56 = sphi 0, %s55
      %s72 = sphi 0, %s56
      %s80 = sphi 0, %s82
      %s83 = sphi 0, %s80
      %s84 = sphi 0, %s83
      %s100 = sphi 0, %s84
      %s108 = sphi 0, %s110
      %s111 = sphi 0, %s108
      %s112 = sphi 0, %s111
      %s128 = sphi 0, %s112
      %s136 = sphi 0, %s138
      %s139 = sphi 0, %s136
      %s140 = sphi 0, %s139
      %s156 = sphi 0, %s140
      %s164 = sphi 0, %s166
      %s167 = sphi 0, %s164
      %s168 = sphi 0, %s167
      %s184 = sphi 0, %s168
      %s192 = sphi 0, %s194
      %s195 = sphi 0, %s192
      %s196 = sphi 0, %s195
      %s212 = sphi 0, %s196
      %s220 = sphi 0, %s222
      %s223 = sphi 0, %s220
      %s224 = sphi 0, %s223
      %s240 = sphi 0, %s224
    $region4: #{tpu_custom_call.1} parent=1 // loop_header_branch
      %31 = sbr.rel (%p29) target = $region8
    $region5: #{tpu_custom_call.1} parent=1 // loop_body
      %s33 = ssub.s32 %s28, 1
      %s34 = ssub.s32 %s28, 2
      %s41 = sadd.s32 1, %s36
      %p42 = scmp.ge.s32.totalorder %s41, 2
      %s43 = scalar_select %p42, 0, %s41
      %s44 = sadd.s32 1, %s35
      %s45 = scalar_select %p42, %s44, %s35
      %p46 = scmp.ge.s32.totalorder %s45, 1
      %s47 = scalar_select %p46, 0, %s45
      %s48 = ssub.s32 %s36, %s43
      %s49 = ssub.s32 %s35, %s47
      %s50 = sor.u32 %s48, %s49
      %p51 = scmp.eq.s32.totalorder %s50, 0
      %s53 = sadd.s32 %s52, 1
      %s54 = scalar_select %p51, %s52, %s53
      %p57 = pneg %p51
      %p58 = scmp.eq.s32.totalorder %s28, 1
      %p59 = por %p57, %p58
      %p60 = scmp.ne.s32.totalorder %s52, %s55
      %p61 = scmp.eq.s32.totalorder %s28, 0
      %p62 = por %p60, %p61
      %p63 = scmp.ne.s32.totalorder %s52, %s55
      %p64 = scmp.eq.s32.totalorder %s33, 1
      %p65 = por %p63, %p64
      %p66 = scmp.ne.s32.totalorder %s55, %s56
      %p67 = scmp.eq.s32.totalorder %s33, 0
      %p68 = por %p66, %p67
      %p69 = scmp.ne.s32.totalorder %s55, %s56
      %p70 = scmp.eq.s32.totalorder %s34, 1
      %p71 = por %p69, %p70
      %p73 = scmp.ne.s32.totalorder %s56, %s72
      %p74 = scmp.eq.s32.totalorder %s34, 0
      %p75 = por %p73, %p74
      %s76 = ssub.s32 %s36, %s43
      %s77 = ssub.s32 %s35, %s47
      %s78 = sor.u32 %s76, %s77
      %p79 = scmp.eq.s32.totalorder %s78, 0
      %s81 = sadd.s32 %s80, 1
      %s82 = scalar_select %p79, %s80, %s81
      %p85 = pneg %p79
      %p86 = scmp.eq.s32.totalorder %s28, 1
      %p87 = por %p85, %p86
      %p88 = scmp.ne.s32.totalorder %s80, %s83
      %p89 = scmp.eq.s32.totalorder %s28, 0
      %p90 = por %p88, %p89
      %p91 = scmp.ne.s32.totalorder %s80, %s83
      %p92 = scmp.eq.s32.totalorder %s33, 1
      %p93 = por %p91, %p92
      %p94 = scmp.ne.s32.totalorder %s83, %s84
      %p95 = scmp.eq.s32.totalorder %s33, 0
      %p96 = por %p94, %p95
      %p97 = scmp.ne.s32.totalorder %s83, %s84
      %p98 = scmp.eq.s32.totalorder %s34, 1
      %p99 = por %p97, %p98
      %p101 = scmp.ne.s32.totalorder %s84, %s100
      %p102 = scmp.eq.s32.totalorder %s34, 0
      %p103 = por %p101, %p102
      %s104 = ssub.s32 %s36, %s43
      %s105 = ssub.s32 %s35, %s47
      %s106 = sor.u32 %s104, %s105
      %p107 = scmp.eq.s32.totalorder %s106, 0
      %s109 = sadd.s32 %s108, 1
      %s110 = scalar_select %p107, %s108, %s109
      %p113 = pneg %p107
      %p114 = scmp.eq.s32.totalorder %s28, 1
      %p115 = por %p113, %p114
      %p116 = scmp.ne.s32.totalorder %s108, %s111
      %p117 = scmp.eq.s32.totalorder %s28, 0
      %p118 = por %p116, %p117
      %p119 = scmp.ne.s32.totalorder %s108, %s111
      %p120 = scmp.eq.s32.totalorder %s33, 1
      %p121 = por %p119, %p120
      %p122 = scmp.ne.s32.totalorder %s111, %s112
      %p123 = scmp.eq.s32.totalorder %s33, 0
      %p124 = por %p122, %p123
      %p125 = scmp.ne.s32.totalorder %s111, %s112
      %p126 = scmp.eq.s32.totalorder %s34, 1
      %p127 = por %p125, %p126
      %p129 = scmp.ne.s32.totalorder %s112, %s128
      %p130 = scmp.eq.s32.totalorder %s34, 0
      %p131 = por %p129, %p130
      %s132 = ssub.s32 %s36, %s43
      %s133 = ssub.s32 %s35, %s47
      %s134 = sor.u32 %s132, %s133
      %p135 = scmp.eq.s32.totalorder %s134, 0
      %s137 = sadd.s32 %s136, 1
      %s138 = scalar_select %p135, %s136, %s137
      %p141 = pneg %p135
      %p142 = scmp.eq.s32.totalorder %s28, 1
      %p143 = por %p141, %p142
      %p144 = scmp.ne.s32.totalorder %s136, %s139
      %p145 = scmp.eq.s32.totalorder %s28, 0
      %p146 = por %p144, %p145
      %p147 = scmp.ne.s32.totalorder %s136, %s139
      %p148 = scmp.eq.s32.totalorder %s33, 1
      %p149 = por %p147, %p148
      %p150 = scmp.ne.s32.totalorder %s139, %s140
      %p151 = scmp.eq.s32.totalorder %s33, 0
      %p152 = por %p150, %p151
      %p153 = scmp.ne.s32.totalorder %s139, %s140
      %p154 = scmp.eq.s32.totalorder %s34, 1
      %p155 = por %p153, %p154
      %p157 = scmp.ne.s32.totalorder %s140, %s156
      %p158 = scmp.eq.s32.totalorder %s34, 0
      %p159 = por %p157, %p158
      %s160 = ssub.s32 %s36, %s43
      %s161 = ssub.s32 %s35, %s47
      %s162 = sor.u32 %s160, %s161
      %p163 = scmp.eq.s32.totalorder %s162, 0
      %s165 = sadd.s32 %s164, 1
      %s166 = scalar_select %p163, %s164, %s165
      %p169 = pneg %p163
      %p170 = scmp.eq.s32.totalorder %s28, 1
      %p171 = por %p169, %p170
      %p172 = scmp.ne.s32.totalorder %s164, %s167
      %p173 = scmp.eq.s32.totalorder %s28, 0
      %p174 = por %p172, %p173
      %p175 = scmp.ne.s32.totalorder %s164, %s167
      %p176 = scmp.eq.s32.totalorder %s33, 1
      %p177 = por %p175, %p176
      %p178 = scmp.ne.s32.totalorder %s167, %s168
      %p179 = scmp.eq.s32.totalorder %s33, 0
      %p180 = por %p178, %p179
      %p181 = scmp.ne.s32.totalorder %s167, %s168
      %p182 = scmp.eq.s32.totalorder %s34, 1
      %p183 = por %p181, %p182
      %p185 = scmp.ne.s32.totalorder %s168, %s184
      %p186 = scmp.eq.s32.totalorder %s34, 0
      %p187 = por %p185, %p186
      %s188 = ssub.s32 %s36, %s43
      %s189 = ssub.s32 %s35, %s47
      %s190 = sor.u32 %s188, %s189
      %p191 = scmp.eq.s32.totalorder %s190, 0
      %s193 = sadd.s32 %s192, 1
      %s194 = scalar_select %p191, %s192, %s193
      %p197 = pneg %p191
      %p198 = scmp.eq.s32.totalorder %s28, 1
      %p199 = por %p197, %p198
      %p200 = scmp.ne.s32.totalorder %s192, %s195
      %p201 = scmp.eq.s32.totalorder %s28, 0
      %p202 = por %p200, %p201
      %p203 = scmp.ne.s32.totalorder %s192, %s195
      %p204 = scmp.eq.s32.totalorder %s33, 1
      %p205 = por %p203, %p204
      %p206 = scmp.ne.s32.totalorder %s195, %s196
      %p207 = scmp.eq.s32.totalorder %s33, 0
      %p208 = por %p206, %p207
      %p209 = scmp.ne.s32.totalorder %s195, %s196
      %p210 = scmp.eq.s32.totalorder %s34, 1
      %p211 = por %p209, %p210
      %p213 = scmp.ne.s32.totalorder %s196, %s212
      %p214 = scmp.eq.s32.totalorder %s34, 0
      %p215 = por %p213, %p214
      %s216 = ssub.s32 %s36, %s43
      %s217 = ssub.s32 %s35, %s47
      %s218 = sor.u32 %s216, %s217
      %p219 = scmp.eq.s32.totalorder %s218, 0
      %s221 = sadd.s32 %s220, 1
      %s222 = scalar_select %p219, %s220, %s221
      %p225 = pneg %p219
      %p226 = scmp.eq.s32.totalorder %s28, 1
      %p227 = por %p225, %p226
      %p228 = scmp.ne.s32.totalorder %s220, %s223
      %p229 = scmp.eq.s32.totalorder %s28, 0
      %p230 = por %p228, %p229
      %p231 = scmp.ne.s32.totalorder %s220, %s223
      %p232 = scmp.eq.s32.totalorder %s33, 1
      %p233 = por %p231, %p232
      %p234 = scmp.ne.s32.totalorder %s223, %s224
      %p235 = scmp.eq.s32.totalorder %s33, 0
      %p236 = por %p234, %p235
      %p237 = scmp.ne.s32.totalorder %s223, %s224
      %p238 = scmp.eq.s32.totalorder %s34, 1
      %p239 = por %p237, %p238
      %p241 = scmp.ne.s32.totalorder %s224, %s240
      %p242 = scmp.eq.s32.totalorder %s34, 0
      %p243 = por %p241, %p242
      %p244 = scmp.le.s32.totalorder 1, %s28
      %p245 = scmp.lt.s32.totalorder %s28, 3
      %p246 = pnand %p244, %p245
      %p247 = pneg %p246
      // Predicated region
      $region9: #{tpu_custom_call.1} parent=5 // pred_check
        _
      $region10: #{tpu_custom_call.1} parent=5 // pred_check_branch
        %249 = sbr.rel (%p246) target = $region12
      $region11: #{tpu_custom_call.1} parent=5 // pred_region
        %s250 = ssub.s32 %s28, 1
      $region12: #{tpu_custom_call.1} parent=5 // pred_fallthru
        _
      %p251 = scmp.lt.s32.totalorder %s28, 2
      // Predicated region
      $region13: #{tpu_custom_call.1} parent=5 // pred_check
        %p252 = pneg %p251
      $region14: #{tpu_custom_call.1} parent=5 // pred_check_branch
        %254 = sbr.rel (%p252) target = $region16
      $region15: #{tpu_custom_call.1} parent=5 // pred_region
        // Predicated region
        $region17: #{tpu_custom_call.1} parent=15 // pred_check
          %p255 = pneg %p62
        $region18: #{tpu_custom_call.1} parent=15 // pred_check_branch
          %257 = sbr.rel (%p255) target = $region20
        $region19: #{tpu_custom_call.1} parent=15 // pred_region
          %s258 = sand.u32 %s52, 1
          %s259 = scalar_lea.sflag [#allocation3], %s258
          %s260 = sand.u32 %s52, 1
          %s261 = smul.addr %s260, 6
          %s262 = scalar_lea.vmem [#allocation2], %s261
          %264 = vsyncadd %s259, 0
          %s265 = smul.addr %s36, 3
          %s266 = sadd.s32 %s35, %s265
          %s267 = smul.addr %s266, 2
          %s268 = scalar_lea.hbm %s0, %s267
          %s269 = sshll.u32 %s268, 4
          %s270 = int_to_ptr.hbm [resolvable:$true] %s269
          %s271 = sshll.u32 %s262, 4
          %s272 = int_to_ptr.vmem [resolvable:$true] %s271
          %277 = dma.hbm_to_vmem [thread:$0]  %s270, 96, %s272, %s259, 32, 32, 2
        $region20: #{tpu_custom_call.1} parent=15 // pred_fallthru
          _
        // Predicated region
        $region21: #{tpu_custom_call.1} parent=15 // pred_check
          %p278 = pneg %p90
        $region22: #{tpu_custom_call.1} parent=15 // pred_check_branch
          %280 = sbr.rel (%p278) target = $region24
        $region23: #{tpu_custom_call.1} parent=15 // pred_region
          %s281 = sand.u32 %s28, 1
          %s282 = scalar_lea.sflag [#allocation6], %s281
          %s283 = sand.u32 %s80, 1
          %s284 = smul.addr %s283, 2
          %s285 = scalar_lea.vmem [#allocation5], %s284
          %287 = vsyncadd %s282, 0
          %s288 = sadd.s32 %s35, %s36
          %s289 = smul.addr %s288, 2
          %s290 = scalar_lea.hbm %s1, %s289
          %s292 = sshll.u32 %s290, 4
          %s293 = int_to_ptr.hbm [resolvable:$true] %s292
          %s294 = sshll.u32 %s285, 4
          %s295 = int_to_ptr.vmem [resolvable:$true] %s294
          %297 = dma.hbm_to_vmem [thread:$0]  %s293, 32, %s295, %s282
        $region24: #{tpu_custom_call.1} parent=15 // pred_fallthru
          _
        // Predicated region
        $region25: #{tpu_custom_call.1} parent=15 // pred_check
          %p298 = pneg %p118
        $region26: #{tpu_custom_call.1} parent=15 // pred_check_branch
          %300 = sbr.rel (%p298) target = $region28
        $region27: #{tpu_custom_call.1} parent=15 // pred_region
          %s301 = sand.u32 %s28, 1
          %s302 = scalar_lea.sflag [#allocation6], %s301
          %s303 = sand.u32 %s108, 1
          %s304 = smul.addr %s303, 2
          %s305 = scalar_lea.vmem [#allocation7], %s304
          %307 = vsyncadd %s302, 0
          %s308 = sadd.s32 %s35, %s36
          %s309 = smul.addr %s308, 2
          %s310 = scalar_lea.hbm %s2, %s309
          %s312 = sshll.u32 %s310, 4
          %s313 = int_to_ptr.hbm [resolvable:$true] %s312
          %s314 = sshll.u32 %s305, 4
          %s315 = int_to_ptr.vmem [resolvable:$true] %s314
          %317 = dma.hbm_to_vmem [thread:$0]  %s313, 32, %s315, %s302
        $region28: #{tpu_custom_call.1} parent=15 // pred_fallthru
          _
        // Predicated region
        $region29: #{tpu_custom_call.1} parent=15 // pred_check
          %p318 = pneg %p146
        $region30: #{tpu_custom_call.1} parent=15 // pred_check_branch
          %320 = sbr.rel (%p318) target = $region32
        $region31: #{tpu_custom_call.1} parent=15 // pred_region
          %s321 = sand.u32 %s136, 1
          %s322 = scalar_lea.sflag [#allocation9], %s321
          %s323 = sand.u32 %s136, 1
          %s324 = smul.addr %s323, 2
          %s325 = scalar_lea.vmem [#allocation8], %s324
          %327 = vsyncadd %s322, 0
          %s328 = sadd.s32 %s35, %s36
          %s329 = smul.addr %s328, 2
          %s330 = scalar_lea.hbm %s3, %s329
          %s332 = sshll.u32 %s330, 4
          %s333 = int_to_ptr.hbm [resolvable:$true] %s332
          %s334 = sshll.u32 %s325, 4
          %s335 = int_to_ptr.vmem [resolvable:$true] %s334
          %337 = dma.hbm_to_vmem [thread:$0]  %s333, 32, %s335, %s322
        $region32: #{tpu_custom_call.1} parent=15 // pred_fallthru
          _
      $region16: #{tpu_custom_call.1} parent=5 // pred_fallthru
        _
      %p338 = scmp.le.s32.totalorder 1, %s28
      %p339 = scmp.lt.s32.totalorder %s28, 3
      %p340 = pnand %p338, %p339
      %p341 = pneg %p340
      // Predicated region
      $region33: #{tpu_custom_call.1} parent=5 // pred_check
        _
      $region34: #{tpu_custom_call.1} parent=5 // pred_check_branch
        %343 = sbr.rel (%p340) target = $region36
      $region35: #{tpu_custom_call.1} parent=5 // pred_region
        %s344 = ssub.s32 %s28, 1
        %s345 = sand.u32 %s55, 1
        %s346 = scalar_lea.sflag [#allocation3], %s345
        %s347 = sand.u32 %s55, 1
        %s348 = smul.addr %s347, 6
        %s349 = scalar_lea.vmem [#allocation2], %s348
        // Predicated region
        $region37: #{tpu_custom_call.1} parent=35 // pred_check
          %p350 = pneg %p68
        $region38: #{tpu_custom_call.1} parent=35 // pred_check_branch
          %352 = sbr.rel (%p350) target = $region40
        $region39: #{tpu_custom_call.1} parent=35 // pred_region
          %354 = dma.done %s346, 96
        $region40: #{tpu_custom_call.1} parent=35 // pred_fallthru
          _
        %s355 = sand.u32 %s33, 1
        %s356 = scalar_lea.sflag [#allocation6], %s355
        %s357 = sand.u32 %s83, 1
        %s358 = smul.addr %s357, 2
        %s359 = scalar_lea.vmem [#allocation5], %s358
        // Predicated region
        $region41: #{tpu_custom_call.1} parent=35 // pred_check
          %p360 = pneg %p96
        $region42: #{tpu_custom_call.1} parent=35 // pred_check_branch
          %362 = sbr.rel (%p360) target = $region44
        $region43: #{tpu_custom_call.1} parent=35 // pred_region
          %364 = dma.done %s356, 32
        $region44: #{tpu_custom_call.1} parent=35 // pred_fallthru
          _
        %s365 = sand.u32 %s33, 1
        %s366 = scalar_lea.sflag [#allocation6], %s365
        %s367 = sand.u32 %s111, 1
        %s368 = smul.addr %s367, 2
        %s369 = scalar_lea.vmem [#allocation7], %s368
        // Predicated region
        $region45: #{tpu_custom_call.1} parent=35 // pred_check
          %p370 = pneg %p124
        $region46: #{tpu_custom_call.1} parent=35 // pred_check_branch
          %372 = sbr.rel (%p370) target = $region48
        $region47: #{tpu_custom_call.1} parent=35 // pred_region
          %374 = dma.done %s366, 32
        $region48: #{tpu_custom_call.1} parent=35 // pred_fallthru
          _
        %s375 = sand.u32 %s139, 1
        %s376 = scalar_lea.sflag [#allocation9], %s375
        %s377 = sand.u32 %s139, 1
        %s378 = smul.addr %s377, 2
        %s379 = scalar_lea.vmem [#allocation8], %s378
        // Predicated region
        $region49: #{tpu_custom_call.1} parent=35 // pred_check
          %p380 = pneg %p152
        $region50: #{tpu_custom_call.1} parent=35 // pred_check_branch
          %382 = sbr.rel (%p380) target = $region52
        $region51: #{tpu_custom_call.1} parent=35 // pred_region
          %384 = dma.done %s376, 32
        $region52: #{tpu_custom_call.1} parent=35 // pred_fallthru
          _
        %s385 = sand.u32 %s55, 1
        %s386 = scalar_lea.sflag [#allocation3], %s385
        %s387 = sand.u32 %s55, 1
        %s388 = smul.addr %s387, 6
        %s389 = scalar_lea.vmem [#allocation2], %s388
        %p390 = pneg %p68
        %p391 = pneg %p65
        %s392 = sand.u32 %s33, 1
        %s393 = scalar_lea.sflag [#allocation6], %s392
        %s394 = sand.u32 %s83, 1
        %s395 = smul.addr %s394, 2
        %s396 = scalar_lea.vmem [#allocation5], %s395
        %p397 = pneg %p96
        %p398 = pneg %p93
        %s399 = sand.u32 %s33, 1
        %s400 = scalar_lea.sflag [#allocation6], %s399
        %s401 = sand.u32 %s111, 1
        %s402 = smul.addr %s401, 2
        %s403 = scalar_lea.vmem [#allocation7], %s402
        %p404 = pneg %p124
        %p405 = pneg %p121
        %s406 = sand.u32 %s139, 1
        %s407 = scalar_lea.sflag [#allocation9], %s406
        %s408 = sand.u32 %s139, 1
        %s409 = smul.addr %s408, 2
        %s410 = scalar_lea.vmem [#allocation8], %s409
        %p411 = pneg %p152
        %p412 = pneg %p149
        %p413 = pneg %p180
        %p414 = pneg %p177
        %s415 = sand.u32 %s167, 1
        %s416 = scalar_lea.sflag [#allocation4], %s415
        %s417 = sand.u32 %s167, 1
        %s418 = smul.addr %s417, 12
        %s419 = scalar_lea.vmem [#allocation10], %s418
        %p420 = pneg %p208
        %p421 = pneg %p205
        %s422 = sand.u32 %s33, 1
        %s423 = scalar_lea.sflag [#allocation12], %s422
        %s424 = sand.u32 %s195, 1
        %s425 = smul.addr %s424, 6
        %s426 = scalar_lea.vmem [#allocation11], %s425
        %p427 = pneg %p236
        %p428 = pneg %p233
        %s429 = sand.u32 %s33, 1
        %s430 = scalar_lea.sflag [#allocation12], %s429
        %s431 = sand.u32 %s223, 1
        %s432 = smul.addr %s431, 2
        %s433 = scalar_lea.vmem [#allocation13], %s432
        %v434 = vld [vmem:[%s379] sm:$0x3]
        %v435 = vsub.f32 1.0, %v434
        %v436 = vld [vmem:[%s349] sm:$0x3]
        %v437 = vld [vmem:[%s349 + $0x2] sm:$0x3]
        %v438 = vld [vmem:[%s349 + $0x4] sm:$0x3]
        %v439 = vmul.f32 %v436, %v435
        %v440 = vmul.f32 %v437, %v435
        %v441 = vmul.f32 %v438, %v435
        %v442 = vadd.f32 %v439, %v434
        %v443 = vadd.f32 %v440, %v434
        %v444 = vadd.f32 %v441, %v434
        %v445 = vld [vmem:[%s369] sm:$0x3]
        %v446 = vmul.f32 %v445, %v435
        %447 = vst [vmem:[%s419] sm:$0x3] %v442
        %448 = vst [vmem:[%s419 + $0x2] sm:$0x3] %v443
        %449 = vst [vmem:[%s419 + $0x4] sm:$0x3] %v444
        %v450 = vld [vmem:[%s359] sm:$0x3]
        %s451 = scalar_lea.vmem %s419, 6 [#allocation10]
        %452 = vst [vmem:[%s451] sm:$0x3] %v450
        %s453 = scalar_lea.vmem %s419, 8 [#allocation10]
        %454 = vst [vmem:[%s453] sm:$0x3] %v446
        %s455 = scalar_lea.vmem %s419, 10 [#allocation10]
        %456 = vst [vmem:[%s455] sm:$0x3] %v434
        %457 = vst [vmem:[%s426] sm:$0x3] %v442
        %458 = vst [vmem:[%s426 + $0x2] sm:$0x3] %v443
        %459 = vst [vmem:[%s426 + $0x4] sm:$0x3] %v444
        %460 = vst [vmem:[%s433] sm:$0x3] %v446
        %s461 = sand.u32 %s167, 1
        %s462 = scalar_lea.sflag [#allocation4], %s461
        %s463 = sand.u32 %s167, 1
        %s464 = smul.addr %s463, 12
        %s465 = scalar_lea.vmem [#allocation10], %s464
        %s466 = sand.u32 %s33, 1
        %s467 = scalar_lea.sflag [#allocation12], %s466
        %s468 = sand.u32 %s195, 1
        %s469 = smul.addr %s468, 6
        %s470 = scalar_lea.vmem [#allocation11], %s469
        %s471 = sand.u32 %s33, 1
        %s472 = scalar_lea.sflag [#allocation12], %s471
        %s473 = sand.u32 %s223, 1
        %s474 = smul.addr %s473, 2
        %s475 = scalar_lea.vmem [#allocation13], %s474
        // Predicated region
        $region53: #{tpu_custom_call.1} parent=35 // pred_check
          %p476 = pneg %p177
        $region54: #{tpu_custom_call.1} parent=35 // pred_check_branch
          %478 = sbr.rel (%p476) target = $region56
        $region55: #{tpu_custom_call.1} parent=35 // pred_region
          %480 = vsyncadd %s462, 0
          %s481 = smul.addr %s38, 6
          %s482 = sadd.s32 %s37, %s481
          %s483 = smul.addr %s482, 2
          %s484 = scalar_lea.hbm %s4, %s483
          %s485 = sshll.u32 %s465, 4
          %s486 = int_to_ptr.vmem [resolvable:$true] %s485
          %s487 = sshll.u32 %s484, 4
          %s488 = int_to_ptr.hbm [resolvable:$true] %s487
          %493 = dma.vmem_to_hbm [thread:$0]  %s486, 192, %s488, %s462, 32, 32, 2
        $region56: #{tpu_custom_call.1} parent=35 // pred_fallthru
          _
        // Predicated region
        $region57: #{tpu_custom_call.1} parent=35 // pred_check
          %p494 = pneg %p205
        $region58: #{tpu_custom_call.1} parent=35 // pred_check_branch
          %496 = sbr.rel (%p494) target = $region60
        $region59: #{tpu_custom_call.1} parent=35 // pred_region
          %498 = vsyncadd %s467, 0
          %s499 = smul.addr %s38, 3
          %s500 = sadd.s32 %s37, %s499
          %s501 = smul.addr %s500, 2
          %s502 = scalar_lea.hbm %s5, %s501
          %s503 = sshll.u32 %s470, 4
          %s504 = int_to_ptr.vmem [resolvable:$true] %s503
          %s505 = sshll.u32 %s502, 4
          %s506 = int_to_ptr.hbm [resolvable:$true] %s505
          %511 = dma.vmem_to_hbm [thread:$0]  %s504, 96, %s506, %s467, 32, 32, 2
        $region60: #{tpu_custom_call.1} parent=35 // pred_fallthru
          _
        // Predicated region
        $region61: #{tpu_custom_call.1} parent=35 // pred_check
          %p512 = pneg %p233
        $region62: #{tpu_custom_call.1} parent=35 // pred_check_branch
          %514 = sbr.rel (%p512) target = $region64
        $region63: #{tpu_custom_call.1} parent=35 // pred_region
          %516 = vsyncadd %s472, 0
          %s517 = sadd.s32 %s37, %s38
          %s518 = smul.addr %s517, 2
          %s519 = scalar_lea.hbm %s6, %s518
          %s521 = sshll.u32 %s475, 4
          %s522 = int_to_ptr.vmem [resolvable:$true] %s521
          %s523 = sshll.u32 %s519, 4
          %s524 = int_to_ptr.hbm [resolvable:$true] %s523
          %526 = dma.vmem_to_hbm [thread:$0]  %s522, 32, %s524, %s472
        $region64: #{tpu_custom_call.1} parent=35 // pred_fallthru
          _
      $region36: #{tpu_custom_call.1} parent=5 // pred_fallthru
        _
      %p527 = scmp.le.s32.totalorder 2, %s28
      // Predicated region
      $region65: #{tpu_custom_call.1} parent=5 // pred_check
        %p528 = pneg %p527
      $region66: #{tpu_custom_call.1} parent=5 // pred_check_branch
        %530 = sbr.rel (%p528) target = $region68
      $region67: #{tpu_custom_call.1} parent=5 // pred_region
        %s531 = ssub.s32 %s28, 2
        // Predicated region
        $region69: #{tpu_custom_call.1} parent=67 // pred_check
          %p532 = pneg %p183
        $region70: #{tpu_custom_call.1} parent=67 // pred_check_branch
          %534 = sbr.rel (%p532) target = $region72
        $region71: #{tpu_custom_call.1} parent=67 // pred_region
          %s535 = sand.u32 %s168, 1
          %s536 = scalar_lea.sflag [#allocation4], %s535
          %s537 = sand.u32 %s168, 1
          %s538 = smul.addr %s537, 12
          %s539 = scalar_lea.vmem [#allocation10], %s538
          %541 = dma.done %s536, 192
        $region72: #{tpu_custom_call.1} parent=67 // pred_fallthru
          _
        // Predicated region
        $region73: #{tpu_custom_call.1} parent=67 // pred_check
          %p542 = pneg %p211
        $region74: #{tpu_custom_call.1} parent=67 // pred_check_branch
          %544 = sbr.rel (%p542) target = $region76
        $region75: #{tpu_custom_call.1} parent=67 // pred_region
          %s545 = sand.u32 %s34, 1
          %s546 = scalar_lea.sflag [#allocation12], %s545
          %s547 = sand.u32 %s196, 1
          %s548 = smul.addr %s547, 6
          %s549 = scalar_lea.vmem [#allocation11], %s548
          %551 = dma.done %s546, 96
        $region76: #{tpu_custom_call.1} parent=67 // pred_fallthru
          _
        // Predicated region
        $region77: #{tpu_custom_call.1} parent=67 // pred_check
          %p552 = pneg %p239
        $region78: #{tpu_custom_call.1} parent=67 // pred_check_branch
          %554 = sbr.rel (%p552) target = $region80
        $region79: #{tpu_custom_call.1} parent=67 // pred_region
          %s555 = sand.u32 %s34, 1
          %s556 = scalar_lea.sflag [#allocation12], %s555
          %s557 = sand.u32 %s224, 1
          %s558 = smul.addr %s557, 2
          %s559 = scalar_lea.vmem [#allocation13], %s558
          %561 = dma.done %s556, 32
        $region80: #{tpu_custom_call.1} parent=67 // pred_fallthru
          _
      $region68: #{tpu_custom_call.1} parent=5 // pred_fallthru
        _
    $region6: #{tpu_custom_call.1} parent=1 // loop_footer
      %s32 = sadd.s32 1, %s28
    $region7: #{tpu_custom_call.1} parent=1 // loop_footer_branch
      %27 = sbr.rel target = $region3
    $region8: #{tpu_custom_call.1} parent=1 // loop_exit
      _
    %562 = vsyncpa [#allocation3], 1
    %s563 = scalar_lea.sflag [#allocation3], 1
    %564 = vsyncpa %s563, 1
    %565 = vsyncpa [#allocation6], 1
    %s566 = scalar_lea.sflag [#allocation6], 1
    %567 = vsyncpa %s566, 1
    %568 = vsyncpa [#allocation9], 1
    %s569 = scalar_lea.sflag [#allocation9], 1
    %570 = vsyncpa %s569, 1
    %571 = vsyncpa [#allocation4], 1
    %s572 = scalar_lea.sflag [#allocation4], 1
    %573 = vsyncpa %s572, 1
    %574 = vsyncpa [#allocation12], 1
    %s575 = scalar_lea.sflag [#allocation12], 1
    %576 = vsyncpa %s575, 1

</llo_original>
